<compile_context>
chip_gen: v7x
topology: tpu7x:2x2x1
jax: 0.10.0
libtpu: 0.0.40
codegen_flags: <defaults>
</compile_context>

<pallas_src>
import functools
import math

import jax
import jax.numpy as jnp
from jax.experimental import pallas as pl
from jax.experimental.pallas import tpu as pltpu


def _combined_loss_kernel(logits_ref, tgt_ref, out_ref,
                          acc_ce, acc_focal, acc_sig, acc_tp, *,
                          gamma, alpha, block_n, total_n,
                          blocks_per_split, has_partial):
    p = pl.program_id(0)            # parallel split (v7x: one per TensorCore)
    i = pl.program_id(1)            # streaming reduction over row blocks
    nblk = pl.num_programs(1)

    @pl.when(i == 0)
    def _init():
        acc_ce[...] = jnp.zeros_like(acc_ce)
        acc_focal[...] = jnp.zeros_like(acc_focal)
        acc_sig[...] = jnp.zeros_like(acc_sig)
        acc_tp[...] = jnp.zeros_like(acc_tp)

    logits = logits_ref[...].astype(jnp.float32)          # (TN, C), f32 in-register
    tgt = tgt_ref[...]                                     # (TN, 1) int32 (pad rows == C)
    tn, c = logits.shape

    if has_partial:
        # Only the globally-last tile can be partial; zero its garbage rows so
        # each pad row contributes exactly-known constants that the wrapper
        # subtracts after the kernel (keeps per-quantity masking off the hot
        # path).
        gblk = p * blocks_per_split + i
        row_ids = jax.lax.broadcasted_iota(jnp.int32, (tn, 1), 0) + gblk * block_n
        logits = jnp.where(row_ids < total_n, logits, 0.0)

    class_ids = jax.lax.broadcasted_iota(jnp.int32, (tn, c), 1)
    match = class_ids == tgt                               # all-False on pad rows

    # --- per-sample cross entropy (stable log-softmax) ----------------------
    m = jnp.max(logits, axis=-1, keepdims=True)            # (TN, 1)
    shifted = logits - m
    lse = jnp.log(jnp.sum(jnp.exp(shifted), axis=-1, keepdims=True))
    picked = jnp.sum(jnp.where(match, shifted, 0.0), axis=-1, keepdims=True)
    ce_i = lse - picked                                     # pad rows -> log(C)

    # --- focal numerator  alpha * (1 - pt)^gamma * ce ------------------------
    pt = jnp.exp(-ce_i)
    omp = 1.0 - pt
    if gamma == 2.0:
        pow_term = omp * omp
    elif gamma == 1.0:
        pow_term = omp
    elif gamma == 0.0:
        pow_term = jnp.ones_like(omp)
    else:
        pow_term = jnp.where(
            omp > 0.0,
            jnp.exp(gamma * jnp.log(jnp.maximum(omp, 1e-30))),
            0.0)
    focal_i = alpha * pow_term * ce_i                       # (TN, 1)

    # --- sigmoid-overlap partial sums (Dice / Tversky) -----------------------
    sig = jax.nn.sigmoid(logits)                            # pad rows -> 0.5

    # Vector-shaped accumulators: sublane (axis-0) reductions only per step;
    # the lane collapse happens once in the finalize step.
    acc_ce[...] += jnp.sum(ce_i, keepdims=True)                           # (1,1)
    acc_focal[...] += jnp.sum(focal_i, keepdims=True)                     # (1,1)
    acc_sig[...] += jnp.sum(sig, axis=0, keepdims=True)                   # (1,C)
    acc_tp[...] += jnp.sum(jnp.where(match, sig, 0.0), axis=0, keepdims=True)

    @pl.when(i == nblk - 1)
    def _finalize():
        lane = jax.lax.broadcasted_iota(jnp.int32, (1, 128), 1)
        vec = jnp.where(lane == 0, acc_ce[...], 0.0)
        vec = vec + jnp.where(lane == 1, acc_focal[...], 0.0)
        vec = vec + jnp.where(lane == 2, jnp.sum(acc_sig[...], keepdims=True), 0.0)
        vec = vec + jnp.where(lane == 3, jnp.sum(acc_tp[...], keepdims=True), 0.0)
        out_ref[0] = vec                                     # (1, 128) partial sums


def combined_loss(logits, targets, *, gamma=2.0, alpha=0.25, use_tversky=True,
                  num_classes=None, block_rows=None, num_splits=None):
    """Scalar CombinedLoss (first-call FocalLoss semantics).

    logits:  (N, C) float (f32 / bf16, streamed in native dtype)
    targets: (N,) int, every value in [0, num_classes)
    """
    del use_tversky                      # forward() always adds the tversky term
    n, c = logits.shape
    if num_classes is None:
        num_classes = c
    gamma = float(gamma)
    alpha = float(alpha)

    in_bytes = jnp.dtype(logits.dtype).itemsize
    row_align = {4: 8, 2: 16, 1: 32}.get(in_bytes, 8)

    # ---- tile sizing: by bytes, VMEM-budget aware (lane dim pads to 128) ----
    lanes = max(128, -(-c // 128) * 128)
    per_row = (2 * in_bytes * lanes            # double-buffered native logits block
               + 2 * 4 * 128                   # double-buffered (TN,1) int32 targets
               + 5 * 4 * lanes)                # ~5 live f32 (TN,C) temporaries
    vmem_budget = 26 * 1024 * 1024             # safe on v5e/v6e (128 MiB) and v7x (64 MiB)
    tile_cap_bytes = 4 * 1024 * 1024           # no benefit beyond ~4 MiB native logits

    if block_rows is not None:
        tn = int(block_rows)
    else:
        tn = vmem_budget // per_row
        tn = min(tn, max(1, tile_cap_bytes // max(1, c * in_bytes)))
    tn = max(row_align, (tn // row_align) * row_align)
    if tn >= n:
        tn = n                                  # single full block
    nblk = -(-n // tn)

    # ---- optional split across TensorCores (leading "parallel" grid axis) ---
    if num_splits is None:
        num_splits = 2
    num_splits = max(1, int(num_splits))
    if (num_splits > 1 and block_rows is None and nblk >= num_splits
            and nblk % num_splits != 0):
        target = -(-nblk // num_splits) * num_splits
        cand = -(-n // target)
        cand = max(row_align, -(-cand // row_align) * row_align)
        if cand < n:
            tn = cand
            nblk = -(-n // tn)
    if nblk < num_splits or nblk % num_splits != 0:
        num_splits = 1
    bps = nblk // num_splits                    # blocks per split

    n_total = nblk * tn
    n_pad = n_total - n
    has_partial = n_pad > 0

    # Targets: (N_total, 1) int32 blocks, padded with the out-of-range sentinel
    # C so pad rows never match a class (picked = tp = 0 there).
    tgt = targets.astype(jnp.int32).reshape(n, 1)
    if n_pad:
        tgt = jnp.concatenate(
            [tgt, jnp.full((n_pad, 1), c, dtype=jnp.int32)], axis=0)

    kernel = functools.partial(
        _combined_loss_kernel,
        gamma=gamma, alpha=alpha,
        block_n=int(tn), total_n=int(n),
        blocks_per_split=int(bps), has_partial=bool(has_partial))

    parts = pl.pallas_call(
        kernel,
        out_shape=jax.ShapeDtypeStruct((num_splits, 1, 128), jnp.float32),
        grid=(num_splits, bps),
        in_specs=[
            pl.BlockSpec((tn, c), lambda p, i: (p * bps + i, 0)),   # native dtype
            pl.BlockSpec((tn, 1), lambda p, i: (p * bps + i, 0)),   # int32 targets
        ],
        out_specs=pl.BlockSpec((1, 1, 128), lambda p, i: (p, 0, 0)),
        scratch_shapes=[
            pltpu.VMEM((1, 1), jnp.float32),    # sum cross-entropy
            pltpu.VMEM((1, 1), jnp.float32),    # sum focal numerator
            pltpu.VMEM((1, c), jnp.float32),    # per-class sum sigmoid
            pltpu.VMEM((1, c), jnp.float32),    # per-class sum sigmoid*onehot
        ],
        compiler_params=pltpu.CompilerParams(
            dimension_semantics=("parallel", "arbitrary"),
            vmem_limit_bytes=48 * 1024 * 1024,
        ),
    )(logits, tgt)

    # ---- tiny finalize in plain JAX (combine per-split partial sums) --------
    sums = jnp.sum(parts[:, 0, :4], axis=0)
    sum_ce, sum_focal, sum_sig, tp = sums[0], sums[1], sums[2], sums[3]

    if n_pad:
        # Each pad row had exactly-zero logits and an out-of-range target:
        #   ce = log(C), pt = 1/C, sum(sigmoid) = C/2, tp = 0.
        log_c = math.log(float(c))
        pad_focal = alpha * (1.0 - 1.0 / c) ** gamma * log_c
        sum_ce = sum_ce - n_pad * log_c
        sum_focal = sum_focal - n_pad * pad_focal
        sum_sig = sum_sig - n_pad * (0.5 * c)

    n_f = float(n)
    ce_mean = sum_ce / n_f
    focal = sum_focal / n_f                  # first-call FocalLoss => plain mean
    sum_tgt = n_f                            # each valid row's one-hot sums to 1
    fn_ = sum_tgt - tp
    fp_ = sum_sig - tp
    smooth = 1.0
    dice_loss = 1.0 - (2.0 * tp + smooth) / (sum_sig + sum_tgt + smooth)
    tversky_loss = 1.0 - (tp + smooth) / (tp + 0.5 * fn_ + 0.5 * fp_ + smooth)
    ce_norm = ce_mean / math.log(float(num_classes))
    return 0.25 * focal + 0.25 * dice_loss + 0.25 * ce_norm + 0.25 * tversky_loss


def _reference_combined_loss(logits, targets, *, gamma, alpha, num_classes):
    """Pure-JAX reference mirroring the PyTorch module (first forward call)."""
    logits = logits.astype(jnp.float32)
    n, c = logits.shape
    onehot = jax.nn.one_hot(targets, c, dtype=jnp.float32)
    logp = jax.nn.log_softmax(logits, axis=-1)
    ce_i = -jnp.sum(onehot * logp, axis=-1)
    ce_mean = jnp.mean(ce_i)
    pt = jnp.exp(-ce_i)
    focal = jnp.mean(alpha * (1.0 - pt) ** gamma * ce_i)
    sig = jax.nn.sigmoid(logits)
    tp = jnp.sum(sig * onehot)
    fn = jnp.sum((1.0 - sig) * onehot)
    fp = jnp.sum(sig * (1.0 - onehot))
    dice = (2.0 * tp + 1.0) / (jnp.sum(sig) + jnp.sum(onehot) + 1.0)
    tversky = (tp + 1.0) / (tp + 0.5 * fn + 0.5 * fp + 1.0)
    ce_norm = ce_mean / math.log(float(num_classes))
    return 0.25 * focal + 0.25 * (1.0 - dice) + 0.25 * ce_norm + 0.25 * (1.0 - tversky)


if __name__ == "__main__":
    key = jax.random.PRNGKey(0)
    gamma, alpha = 2.0, 0.25
    k1, k2, k3, k4, k5, k6 = jax.random.split(key, 6)

    # --- case 1: small single-tile, f32 logits (exact check) ----------------
    N, C = 64, 16
    logits = jax.random.normal(k1, (N, C), dtype=jnp.float32)
    targets = jax.random.randint(k2, (N,), 0, C, dtype=jnp.int32)
    loss = jax.block_until_ready(
        combined_loss(logits, targets, gamma=gamma, alpha=alpha, num_classes=C))
    ref = _reference_combined_loss(logits, targets, gamma=gamma, alpha=alpha,
                                   num_classes=C)
    assert jnp.allclose(loss, ref, atol=1e-5, rtol=1e-5), (loss, ref)

    # --- case 2: multi-tile f32 with a padded last tile (P=1) ---------------
    N2, C2, BLK = 200, 16, 32            # 7 tiles, last tile has 8 valid rows
    logits2 = jax.random.normal(k3, (N2, C2), dtype=jnp.float32)
    targets2 = jax.random.randint(k4, (N2,), 0, C2, dtype=jnp.int32)
    loss2 = jax.block_until_ready(
        combined_loss(logits2, targets2, gamma=gamma, alpha=alpha,
                      num_classes=C2, block_rows=BLK))
    ref2 = _reference_combined_loss(logits2, targets2, gamma=gamma, alpha=alpha,
                                    num_classes=C2)
    assert jnp.allclose(loss2, ref2, atol=1e-5, rtol=1e-5), (loss2, ref2)

    # --- case 3: bf16 stream, 2-way parallel split, padded last tile --------
    N3, C3, BLK3 = 250, 16, 32           # 8 tiles -> num_splits=2, 6 pad rows
    logits3 = jax.random.normal(k5, (N3, C3), dtype=jnp.float32).astype(jnp.bfloat16)
    targets3 = jax.random.randint(k6, (N3,), 0, C3, dtype=jnp.int32)
    loss3 = jax.block_until_ready(
        combined_loss(logits3, targets3, gamma=gamma, alpha=alpha,
                      num_classes=C3, block_rows=BLK3))
    ref3 = _reference_combined_loss(logits3.astype(jnp.float32), targets3,
                                    gamma=gamma, alpha=alpha, num_classes=C3)
    assert jnp.allclose(loss3, ref3, atol=2e-2, rtol=2e-2), (loss3, ref3)

    print("KERNEL_OK")
</pallas_src>

<mosaic_0001>
module attributes {stable_mosaic.version = 11 : i64} {
  func.func @_combined_loss_kernel(%arg0: i32, %arg1: i32, %arg2: memref<64x16xf32, #tpu.memory_space<vmem>>, %arg3: memref<64x1xi32, #tpu.memory_space<vmem>>, %arg4: memref<1x1x128xf32, #tpu.memory_space<vmem>>, %arg5: memref<1x1xf32, #tpu.memory_space<vmem>>, %arg6: memref<1x1xf32, #tpu.memory_space<vmem>>, %arg7: memref<1x16xf32, #tpu.memory_space<vmem>>, %arg8: memref<1x16xf32, #tpu.memory_space<vmem>>) attributes {dimension_semantics = [#tpu.dimension_semantics<parallel>, #tpu.dimension_semantics<arbitrary>], iteration_bounds = array<i64: 1, 1>, scalar_prefetch = 0 : i64, scratch_operands = 4 : i64, tpu.core_type = #tpu.core_type<tc>, window_params = [{transform_indices = @transform_0, window_bounds = array<i64: 64, 16>}, {transform_indices = @transform_1, window_bounds = array<i64: 64, 1>}, {transform_indices = @transform_2, window_bounds = array<i64: 1, 1, 128>}]} {
    %c0_i32 = arith.constant 0 : i32
    %0 = arith.cmpi eq, %arg1, %c0_i32 : i32
    %1 = arith.extui %0 : i1 to i32
    %c0_i32_0 = arith.constant 0 : i32
    %2 = arith.cmpi ne, %1, %c0_i32_0 : i32
    scf.if %2 {
      %cst_34 = arith.constant 0.000000e+00 : f32
      %66 = vector.broadcast %cst_34 : f32 to vector<1x1xf32>
      %c0_35 = arith.constant 0 : index
      %c0_36 = arith.constant 0 : index
      %67 = vector.load %arg5[%c0_35, %c0_36] : memref<1x1xf32, #tpu.memory_space<vmem>>, vector<1x1xf32>
      tpu.vector_store %arg5[%c0_35, %c0_36], %66 {strides = array<i32>} : memref<1x1xf32, #tpu.memory_space<vmem>>, vector<1x1xf32>,
      %cst_37 = arith.constant 0.000000e+00 : f32
      %68 = vector.broadcast %cst_37 : f32 to vector<1x1xf32>
      %c0_38 = arith.constant 0 : index
      %c0_39 = arith.constant 0 : index
      %69 = vector.load %arg6[%c0_38, %c0_39] : memref<1x1xf32, #tpu.memory_space<vmem>>, vector<1x1xf32>
      tpu.vector_store %arg6[%c0_38, %c0_39], %68 {strides = array<i32>} : memref<1x1xf32, #tpu.memory_space<vmem>>, vector<1x1xf32>,
      %cst_40 = arith.constant 0.000000e+00 : f32
      %70 = vector.broadcast %cst_40 : f32 to vector<1x16xf32>
      %c0_41 = arith.constant 0 : index
      %c0_42 = arith.constant 0 : index
      %71 = vector.load %arg7[%c0_41, %c0_42] : memref<1x16xf32, #tpu.memory_space<vmem>>, vector<1x16xf32>
      tpu.vector_store %arg7[%c0_41, %c0_42], %70 {strides = array<i32>} : memref<1x16xf32, #tpu.memory_space<vmem>>, vector<1x16xf32>,
      %cst_43 = arith.constant 0.000000e+00 : f32
      %72 = vector.broadcast %cst_43 : f32 to vector<1x16xf32>
      %c0_44 = arith.constant 0 : index
      %c0_45 = arith.constant 0 : index
      %73 = vector.load %arg8[%c0_44, %c0_45] : memref<1x16xf32, #tpu.memory_space<vmem>>, vector<1x16xf32>
      tpu.vector_store %arg8[%c0_44, %c0_45], %72 {strides = array<i32>} : memref<1x16xf32, #tpu.memory_space<vmem>>, vector<1x16xf32>,
    } else {
    }
    %c0 = arith.constant 0 : index
    %c0_1 = arith.constant 0 : index
    %3 = vector.load %arg2[%c0, %c0_1] : memref<64x16xf32, #tpu.memory_space<vmem>>, vector<64x16xf32>
    %c0_2 = arith.constant 0 : index
    %c0_3 = arith.constant 0 : index
    %4 = vector.load %arg3[%c0_2, %c0_3] : memref<64x1xi32, #tpu.memory_space<vmem>>, vector<64x1xi32>
    %5 = tpu.iota {dimensions = array<i32: 1>} : vector<64x16xi32>
    %6 = vector.broadcast %4 : vector<64x1xi32> to vector<64x16xi32>
    %7 = arith.cmpi eq, %5, %6 : vector<64x16xi32>
    %cst = arith.constant dense<0xFF800000> : vector<64xf32>
    %8 = vector.multi_reduction <maximumf>, %3, %cst [1] : vector<64x16xf32> to vector<64xf32>
    %9 = vector.shape_cast %8 : vector<64xf32> to vector<64x1xf32>
    %10 = vector.broadcast %9 : vector<64x1xf32> to vector<64x16xf32>
    %11 = arith.subf %3, %10 : vector<64x16xf32>
    %12 = math.exp %11 : vector<64x16xf32>
    %cst_4 = arith.constant dense<0.000000e+00> : vector<64xf32>
    %13 = vector.multi_reduction <add>, %12, %cst_4 [1] : vector<64x16xf32> to vector<64xf32>
    %14 = vector.shape_cast %13 : vector<64xf32> to vector<64x1xf32>
    %15 = math.log %14 : vector<64x1xf32>
    %cst_5 = arith.constant 0.000000e+00 : f32
    %16 = vector.broadcast %cst_5 : f32 to vector<64x16xf32>
    %17 = arith.select %7, %11, %16 : vector<64x16xi1>, vector<64x16xf32>
    %cst_6 = arith.constant dense<0.000000e+00> : vector<64xf32>
    %18 = vector.multi_reduction <add>, %17, %cst_6 [1] : vector<64x16xf32> to vector<64xf32>
    %19 = vector.shape_cast %18 : vector<64xf32> to vector<64x1xf32>
    %20 = arith.subf %15, %19 : vector<64x1xf32>
    %cst_7 = arith.constant 0.000000e+00 : f32
    %21 = vector.broadcast %cst_7 : f32 to vector<64x1xf32>
    %22 = arith.subf %21, %20 : vector<64x1xf32>
    %23 = math.exp %22 : vector<64x1xf32>
    %cst_8 = arith.constant 1.000000e+00 : f32
    %24 = vector.broadcast %cst_8 : f32 to vector<64x1xf32>
    %25 = arith.subf %24, %23 : vector<64x1xf32>
    %26 = arith.mulf %25, %25 : vector<64x1xf32>
    %cst_9 = arith.constant 2.500000e-01 : f32
    %27 = vector.broadcast %cst_9 : f32 to vector<64x1xf32>
    %28 = arith.mulf %27, %26 : vector<64x1xf32>
    %29 = arith.mulf %28, %20 : vector<64x1xf32>
    %30 = arith.negf %3 : vector<64x16xf32>
    %31 = math.exp %30 : vector<64x16xf32>
    %cst_10 = arith.constant 1.000000e+00 : f32
    %32 = vector.broadcast %cst_10 : f32 to vector<64x16xf32>
    %33 = arith.addf %32, %31 : vector<64x16xf32>
    %34 = arith.divf %32, %33 : vector<64x16xf32>
    %c0_11 = arith.constant 0 : index
    %c0_12 = arith.constant 0 : index
    %35 = vector.load %arg5[%c0_11, %c0_12] : memref<1x1xf32, #tpu.memory_space<vmem>>, vector<1x1xf32>
    %36 = vector.shape_cast %20 : vector<64x1xf32> to vector<1x64x1xf32>
    %cst_13 = arith.constant dense<0.000000e+00> : vector<1xf32>
    %37 = vector.multi_reduction <add>, %36, %cst_13 [1, 2] : vector<1x64x1xf32> to vector<1xf32>
    %38 = vector.shape_cast %37 : vector<1xf32> to vector<1x1x1xf32>
    %39 = vector.extract %38[0, 0, 0] : f32 from vector<1x1x1xf32>
    %40 = vector.broadcast %39 : f32 to vector<1x1xf32>
    %41 = arith.addf %35, %40 : vector<1x1xf32>
    %c0_14 = arith.constant 0 : index
    %c0_15 = arith.constant 0 : index
    %42 = vector.load %arg5[%c0_14, %c0_15] : memref<1x1xf32, #tpu.memory_space<vmem>>, vector<1x1xf32>
    tpu.vector_store %arg5[%c0_14, %c0_15], %41 {strides = array<i32>} : memref<1x1xf32, #tpu.memory_space<vmem>>, vector<1x1xf32>,
    %c0_16 = arith.constant 0 : index
    %c0_17 = arith.constant 0 : index
    %43 = vector.load %arg6[%c0_16, %c0_17] : memref<1x1xf32, #tpu.memory_space<vmem>>, vector<1x1xf32>
    %44 = vector.shape_cast %29 : vector<64x1xf32> to vector<1x64x1xf32>
    %cst_18 = arith.constant dense<0.000000e+00> : vector<1xf32>
    %45 = vector.multi_reduction <add>, %44, %cst_18 [1, 2] : vector<1x64x1xf32> to vector<1xf32>
    %46 = vector.shape_cast %45 : vector<1xf32> to vector<1x1x1xf32>
    %47 = vector.extract %46[0, 0, 0] : f32 from vector<1x1x1xf32>
    %48 = vector.broadcast %47 : f32 to vector<1x1xf32>
    %49 = arith.addf %43, %48 : vector<1x1xf32>
    %c0_19 = arith.constant 0 : index
    %c0_20 = arith.constant 0 : index
    %50 = vector.load %arg6[%c0_19, %c0_20] : memref<1x1xf32, #tpu.memory_space<vmem>>, vector<1x1xf32>
    tpu.vector_store %arg6[%c0_19, %c0_20], %49 {strides = array<i32>} : memref<1x1xf32, #tpu.memory_space<vmem>>, vector<1x1xf32>,
    %c0_21 = arith.constant 0 : index
    %c0_22 = arith.constant 0 : index
    %51 = vector.load %arg7[%c0_21, %c0_22] : memref<1x16xf32, #tpu.memory_space<vmem>>, vector<1x16xf32>
    %cst_23 = arith.constant dense<0.000000e+00> : vector<16xf32>
    %52 = vector.multi_reduction <add>, %34, %cst_23 [0] : vector<64x16xf32> to vector<16xf32>
    %53 = vector.shape_cast %52 : vector<16xf32> to vector<1x16xf32>
    %54 = arith.addf %51, %53 : vector<1x16xf32>
    %c0_24 = arith.constant 0 : index
    %c0_25 = arith.constant 0 : index
    %55 = vector.load %arg7[%c0_24, %c0_25] : memref<1x16xf32, #tpu.memory_space<vmem>>, vector<1x16xf32>
    tpu.vector_store %arg7[%c0_24, %c0_25], %54 {strides = array<i32>} : memref<1x16xf32, #tpu.memory_space<vmem>>, vector<1x16xf32>,
    %c0_26 = arith.constant 0 : index
    %c0_27 = arith.constant 0 : index
    %56 = vector.load %arg8[%c0_26, %c0_27] : memref<1x16xf32, #tpu.memory_space<vmem>>, vector<1x16xf32>
    %cst_28 = arith.constant 0.000000e+00 : f32
    %57 = vector.broadcast %cst_28 : f32 to vector<64x16xf32>
    %58 = arith.select %7, %34, %57 : vector<64x16xi1>, vector<64x16xf32>
    %cst_29 = arith.constant dense<0.000000e+00> : vector<16xf32>
    %59 = vector.multi_reduction <add>, %58, %cst_29 [0] : vector<64x16xf32> to vector<16xf32>
    %60 = vector.shape_cast %59 : vector<16xf32> to vector<1x16xf32>
    %61 = arith.addf %56, %60 : vector<1x16xf32>
    %c0_30 = arith.constant 0 : index
    %c0_31 = arith.constant 0 : index
    %62 = vector.load %arg8[%c0_30, %c0_31] : memref<1x16xf32, #tpu.memory_space<vmem>>, vector<1x16xf32>
    tpu.vector_store %arg8[%c0_30, %c0_31], %61 {strides = array<i32>} : memref<1x16xf32, #tpu.memory_space<vmem>>, vector<1x16xf32>,
    %c0_i32_32 = arith.constant 0 : i32
    %63 = arith.cmpi eq, %arg1, %c0_i32_32 : i32
    %64 = arith.extui %63 : i1 to i32
    %c0_i32_33 = arith.constant 0 : i32
    %65 = arith.cmpi ne, %64, %c0_i32_33 : i32
    scf.if %65 {
      %66 = tpu.iota {dimensions = array<i32: 1>} : vector<1x128xi32>
      %c0_i32_34 = arith.constant 0 : i32
      %67 = vector.broadcast %c0_i32_34 : i32 to vector<1x128xi32>
      %68 = arith.cmpi eq, %66, %67 : vector<1x128xi32>
      %c0_35 = arith.constant 0 : index
      %c0_36 = arith.constant 0 : index
      %69 = vector.load %arg5[%c0_35, %c0_36] : memref<1x1xf32, #tpu.memory_space<vmem>>, vector<1x1xf32>
      %cst_37 = arith.constant 0.000000e+00 : f32
      %70 = vector.shape_cast %69 : vector<1x1xf32> to vector<1x1xf32>
      %71 = vector.broadcast %70 : vector<1x1xf32> to vector<1x128xf32>
      %72 = vector.broadcast %cst_37 : f32 to vector<1x128xf32>
      %73 = arith.select %68, %71, %72 : vector<1x128xi1>, vector<1x128xf32>
      %c1_i32 = arith.constant 1 : i32
      %74 = vector.broadcast %c1_i32 : i32 to vector<1x128xi32>
      %75 = arith.cmpi eq, %66, %74 : vector<1x128xi32>
      %c0_38 = arith.constant 0 : index
      %c0_39 = arith.constant 0 : index
      %76 = vector.load %arg6[%c0_38, %c0_39] : memref<1x1xf32, #tpu.memory_space<vmem>>, vector<1x1xf32>
      %cst_40 = arith.constant 0.000000e+00 : f32
      %77 = vector.shape_cast %76 : vector<1x1xf32> to vector<1x1xf32>
      %78 = vector.broadcast %77 : vector<1x1xf32> to vector<1x128xf32>
      %79 = vector.broadcast %cst_40 : f32 to vector<1x128xf32>
      %80 = arith.select %75, %78, %79 : vector<1x128xi1>, vector<1x128xf32>
      %81 = arith.addf %73, %80 : vector<1x128xf32>
      %c2_i32 = arith.constant 2 : i32
      %82 = vector.broadcast %c2_i32 : i32 to vector<1x128xi32>
      %83 = arith.cmpi eq, %66, %82 : vector<1x128xi32>
      %c0_41 = arith.constant 0 : index
      %c0_42 = arith.constant 0 : index
      %84 = vector.load %arg7[%c0_41, %c0_42] : memref<1x16xf32, #tpu.memory_space<vmem>>, vector<1x16xf32>
      %85 = vector.shape_cast %84 : vector<1x16xf32> to vector<1x1x16xf32>
      %cst_43 = arith.constant dense<0.000000e+00> : vector<1xf32>
      %86 = vector.multi_reduction <add>, %85, %cst_43 [1, 2] : vector<1x1x16xf32> to vector<1xf32>
      %87 = vector.shape_cast %86 : vector<1xf32> to vector<1x1x1xf32>
      %88 = vector.extract %87[0, 0, 0] : f32 from vector<1x1x1xf32>
      %89 = vector.broadcast %88 : f32 to vector<1x1xf32>
      %cst_44 = arith.constant 0.000000e+00 : f32
      %90 = vector.shape_cast %89 : vector<1x1xf32> to vector<1x1xf32>
      %91 = vector.broadcast %90 : vector<1x1xf32> to vector<1x128xf32>
      %92 = vector.broadcast %cst_44 : f32 to vector<1x128xf32>
      %93 = arith.select %83, %91, %92 : vector<1x128xi1>, vector<1x128xf32>
      %94 = arith.addf %81, %93 : vector<1x128xf32>
      %c3_i32 = arith.constant 3 : i32
      %95 = vector.broadcast %c3_i32 : i32 to vector<1x128xi32>
      %96 = arith.cmpi eq, %66, %95 : vector<1x128xi32>
      %c0_45 = arith.constant 0 : index
      %c0_46 = arith.constant 0 : index
      %97 = vector.load %arg8[%c0_45, %c0_46] : memref<1x16xf32, #tpu.memory_space<vmem>>, vector<1x16xf32>
      %98 = vector.shape_cast %97 : vector<1x16xf32> to vector<1x1x16xf32>
      %cst_47 = arith.constant dense<0.000000e+00> : vector<1xf32>
      %99 = vector.multi_reduction <add>, %98, %cst_47 [1, 2] : vector<1x1x16xf32> to vector<1xf32>
      %100 = vector.shape_cast %99 : vector<1xf32> to vector<1x1x1xf32>
      %101 = vector.extract %100[0, 0, 0] : f32 from vector<1x1x1xf32>
      %102 = vector.broadcast %101 : f32 to vector<1x1xf32>
      %cst_48 = arith.constant 0.000000e+00 : f32
      %103 = vector.shape_cast %102 : vector<1x1xf32> to vector<1x1xf32>
      %104 = vector.broadcast %103 : vector<1x1xf32> to vector<1x128xf32>
      %105 = vector.broadcast %cst_48 : f32 to vector<1x128xf32>
      %106 = arith.select %96, %104, %105 : vector<1x128xi1>, vector<1x128xf32>
      %107 = arith.addf %94, %106 : vector<1x128xf32>
      %c0_49 = arith.constant 0 : index
      %c0_50 = arith.constant 0 : index
      %c0_51 = arith.constant 0 : index
      %108 = vector.load %arg4[%c0_49, %c0_50, %c0_51] : memref<1x1x128xf32, #tpu.memory_space<vmem>>, vector<1x1x128xf32>
      %109 = vector.shape_cast %108 : vector<1x1x128xf32> to vector<1x128xf32>
      %110 = vector.shape_cast %107 : vector<1x128xf32> to vector<1x1x128xf32>
      tpu.vector_store %arg4[%c0_49, %c0_50, %c0_51], %110 {strides = array<i32>} : memref<1x1x128xf32, #tpu.memory_space<vmem>>, vector<1x1x128xf32>,
    } else {
    }
    return
  }
  func.func @transform_0(%arg0: i32, %arg1: i32) -> (i32, i32) {
    %c1_i32 = arith.constant 1 : i32
    %0 = arith.muli %arg0, %c1_i32 : i32
    %1 = arith.addi %0, %arg1 : i32
    %c0_i32 = arith.constant 0 : i32
    %c0_i32_0 = arith.constant 0 : i32
    return %1, %c0_i32 : i32, i32
  }
  func.func @transform_1(%arg0: i32, %arg1: i32) -> (i32, i32) {
    %c1_i32 = arith.constant 1 : i32
    %0 = arith.muli %arg0, %c1_i32 : i32
    %1 = arith.addi %0, %arg1 : i32
    %c0_i32 = arith.constant 0 : i32
    %c0_i32_0 = arith.constant 0 : i32
    return %1, %c0_i32 : i32, i32
  }
  func.func @transform_2(%arg0: i32, %arg1: i32) -> (i32, i32, i32) {
    %c0_i32 = arith.constant 0 : i32
    %c0_i32_0 = arith.constant 0 : i32
    %c0_i32_1 = arith.constant 0 : i32
    return %arg0, %c0_i32, %c0_i32_0 : i32, i32, i32
  }
}

</mosaic_0001>

<llo_original>
// kernel: tpu_custom_call.1
$region0: #{tpu_custom_call.1}
  #allocation0 [shape = 'u32[]', space=smem, size = 0x4, offset = 0x4, fixed_abs, tag = 'smem constant byte address 0x4 - core index']
  #allocation1 [shape = 'u32[144,128]{1,0:T(1,128)}', space=vmem, size = 0x12000, scoped, tag = 'internal scratch']
  #allocation2 [shape = 'f32[1,1]{1,0:T(1,128)}', space=vmem, size = 0x200, scoped, tag = 'scratch operand']
  #allocation3 [shape = 'f32[1,1]{1,0:T(1,128)}', space=vmem, size = 0x200, scoped, tag = 'scratch operand']
  #allocation4 [shape = 'f32[1,16]{1,0:T(1,128)}', space=vmem, size = 0x200, scoped, tag = 'scratch operand']
  #allocation5 [shape = 'f32[1,16]{1,0:T(1,128)}', space=vmem, size = 0x200, scoped, tag = 'scratch operand']
  %s0 = inlined_call_operand.vmem [shape: f32[64,16], index: 0, kind: input, shape index: {}]
  %s1 = inlined_call_operand.vmem [shape: s32[64,1], index: 1, kind: input, shape index: {}]
  %s2 = inlined_call_operand.hbm [shape: f32[1,1,128], index: 2, kind: output, shape index: {}]
  %s3 = sld [smem:[#allocation0]]
  $region26: #{tpu_custom_call.1} parent=0
    _
  %s5 = ssub.s32 1, %s3
  %s6 = scalar_select 0, %s5, %s3
  $region1: #{tpu_custom_call.1} parent=0
    #allocation6 [shape = 'u8[512]{0}', space=vmem, size = 0x400, scoped, tag = 'output window, operand 0, single buffered']
    #allocation7 [shape = 's32[1]{0}', space=sflag, size = 0x4, scoped, tag = 'scoped memory for tpu_custom_call.1']
    %7 = vsyncpa [#allocation7], 0
    // Predicated region
    $region2: #{tpu_custom_call.1} parent=1 // pred_check
      _
    $region3: #{tpu_custom_call.1} parent=1 // pred_check_branch
      %9 = sbr.rel (0) target = $region5
    $region4: #{tpu_custom_call.1} parent=1 // pred_region
      %s10 = sadd.s32 0, 0
      %s11 = smul.u32 8, %s10
      %p12 = scmp.lt.s32.totalorder %s11, 7
      %s13 = scalar_select %p12, %s11, 7
      %s14 = smul.addr %s13, 8
      %s15 = scalar_lea.vmem %s0, %s14
      %s16 = sadd.s32 0, 0
      %s17 = smul.u32 8, %s16
    $region5: #{tpu_custom_call.1} parent=1 // pred_fallthru
      _
    // Predicated region
    $region6: #{tpu_custom_call.1} parent=1 // pred_check
      _
    $region7: #{tpu_custom_call.1} parent=1 // pred_check_branch
      %19 = sbr.rel (0) target = $region9
    $region8: #{tpu_custom_call.1} parent=1 // pred_region
      %s20 = sadd.s32 0, 0
      %s21 = smul.u32 8, %s20
      %p22 = scmp.lt.s32.totalorder %s21, 7
      %s23 = scalar_select %p22, %s21, 7
      %s24 = smul.addr %s23, 8
      %s25 = scalar_lea.vmem %s1, %s24
      %s26 = sadd.s32 0, 0
      %s27 = smul.u32 8, %s26
    $region9: #{tpu_custom_call.1} parent=1 // pred_fallthru
      _
    %s28 = sadd.s32 0, 0
    %s29 = smul.u32 8, %s28
    %p30 = scmp.lt.s32.totalorder %s29, 7
    %s31 = scalar_select %p30, %s29, 7
    %s32 = smul.addr %s31, 8
    %s33 = scalar_lea.vmem %s0, %s32
    %s34 = sadd.s32 0, 0
    %s35 = smul.u32 8, %s34
    %p36 = scmp.lt.s32.totalorder %s35, 7
    %s37 = scalar_select %p36, %s35, 7
    %s38 = smul.addr %s37, 8
    %s39 = scalar_lea.vmem %s1, %s38
    %s40 = sadd.s32 0, 0
    %s41 = smul.u32 8, %s40
    %p42 = scmp.lt.s32.totalorder %s41, 7
    %s43 = scalar_select %p42, %s41, 7
    %s44 = smul.addr %s43, 8
    %s45 = scalar_lea.vmem %s0, %s44
    %s46 = sadd.s32 0, 0
    %s47 = smul.u32 8, %s46
    %s48 = sadd.s32 0, 0
    %s49 = smul.u32 8, %s48
    %p50 = scmp.lt.s32.totalorder %s49, 7
    %s51 = scalar_select %p50, %s49, 7
    %s52 = smul.addr %s51, 8
    %s53 = scalar_lea.vmem %s1, %s52
    %s54 = sadd.s32 0, 0
    %s55 = smul.u32 8, %s54
    %p56 = scmp.eq.s32.totalorder 0, 0
    // Predicated region
    $region10: #{tpu_custom_call.1} parent=1 // pred_check
      %p57 = pneg %p56
    $region11: #{tpu_custom_call.1} parent=1 // pred_check_branch
      %59 = sbr.rel (%p57) target = $region13
    $region12: #{tpu_custom_call.1} parent=1 // pred_region
      %vm60 = vcmask 0
      %61 = vst.msk [vmem:[#allocation2] sm:$0x1] %vm60, 0.0
      %62 = vst.msk [vmem:[#allocation3] sm:$0x1] %vm60, 0.0
      %vm63 = vcmask 122880
      %64 = vst.msk [vmem:[#allocation4] sm:$0x1] %vm63, 0.0
      %65 = vst.msk [vmem:[#allocation5] sm:$0x1] %vm63, 0.0
    $region13: #{tpu_custom_call.1} parent=1 // pred_fallthru
      _
    %v66 = vld [vmem:[%s45] sm:$0xff]
    %v67 = vld [vmem:[%s45 + $0x8] sm:$0xff]
    %v68 = vld [vmem:[%s45 + $0x10] sm:$0xff]
    %v69 = vld [vmem:[%s45 + $0x18] sm:$0xff]
    %v70 = vld [vmem:[%s45 + $0x20] sm:$0xff]
    %v71 = vld [vmem:[%s45 + $0x28] sm:$0xff]
    %v72 = vld [vmem:[%s45 + $0x30] sm:$0xff]
    %v73 = vld [vmem:[%s45 + $0x38] sm:$0xff]
    %v74 = vld [vmem:[%s53] sm:$0xff]
    %v75 = vld [vmem:[%s53 + $0x8] sm:$0xff]
    %v76 = vld [vmem:[%s53 + $0x10] sm:$0xff]
    %v77 = vld [vmem:[%s53 + $0x18] sm:$0xff]
    %v78 = vld [vmem:[%s53 + $0x20] sm:$0xff]
    %v79 = vld [vmem:[%s53 + $0x28] sm:$0xff]
    %v80 = vld [vmem:[%s53 + $0x30] sm:$0xff]
    %v81 = vld [vmem:[%s53 + $0x38] sm:$0xff]
    %v82 = vlaneseq
    %v83 = vand.u32 %v82, 127
    %84 = vset.pattern.permute.xlu0 0
    %85 = vperm.xlu0 %84, %v74
    %v86 = vpop.permute.xlu0 %85
    %87 = vset.pattern.permute.xlu0 0
    %88 = vperm.xlu0 %87, %v75
    %v89 = vpop.permute.xlu0 %88
    %90 = vset.pattern.permute.xlu0 0
    %91 = vperm.xlu0 %90, %v76
    %v92 = vpop.permute.xlu0 %91
    %93 = vset.pattern.permute.xlu0 0
    %94 = vperm.xlu0 %93, %v77
    %v95 = vpop.permute.xlu0 %94
    %96 = vset.pattern.permute.xlu0 0
    %97 = vperm.xlu0 %96, %v78
    %v98 = vpop.permute.xlu0 %97
    %99 = vset.pattern.permute.xlu0 0
    %100 = vperm.xlu0 %99, %v79
    %v101 = vpop.permute.xlu0 %100
    %102 = vset.pattern.permute.xlu0 0
    %103 = vperm.xlu0 %102, %v80
    %v104 = vpop.permute.xlu0 %103
    %105 = vset.pattern.permute.xlu0 0
    %106 = vperm.xlu0 %105, %v81
    %v107 = vpop.permute.xlu0 %106
    %vm108 = vcmp.eq.s32.totalorder %v83, %v86
    %vm109 = vcmp.eq.s32.totalorder %v83, %v89
    %vm110 = vcmp.eq.s32.totalorder %v83, %v92
    %vm111 = vcmp.eq.s32.totalorder %v83, %v95
    %vm112 = vcmp.eq.s32.totalorder %v83, %v98
    %vm113 = vcmp.eq.s32.totalorder %v83, %v101
    %vm114 = vcmp.eq.s32.totalorder %v83, %v104
    %vm115 = vcmp.eq.s32.totalorder %v83, %v107
    %vm116 = vcmask 130048
    %v117 = vsel %vm116, %v66, -inf
    %118 = vmax.xlane.f32.xlu0 %v117
    %v119 = vpop.xlane.xlu0 %118
    %v120 = vsel %vm116, %v67, -inf
    %121 = vmax.xlane.f32.xlu0 %v120
    %v122 = vpop.xlane.xlu0 %121
    %v123 = vsel %vm116, %v68, -inf
    %124 = vmax.xlane.f32.xlu0 %v123
    %v125 = vpop.xlane.xlu0 %124
    %v126 = vsel %vm116, %v69, -inf
    %127 = vmax.xlane.f32.xlu0 %v126
    %v128 = vpop.xlane.xlu0 %127
    %v129 = vsel %vm116, %v70, -inf
    %130 = vmax.xlane.f32.xlu0 %v129
    %v131 = vpop.xlane.xlu0 %130
    %v132 = vsel %vm116, %v71, -inf
    %133 = vmax.xlane.f32.xlu0 %v132
    %v134 = vpop.xlane.xlu0 %133
    %v135 = vsel %vm116, %v72, -inf
    %136 = vmax.xlane.f32.xlu0 %v135
    %v137 = vpop.xlane.xlu0 %136
    %v138 = vsel %vm116, %v73, -inf
    %139 = vmax.xlane.f32.xlu0 %v138
    %v140 = vpop.xlane.xlu0 %139
    %v141 = vsub.f32 %v66, %v119
    %v142 = vsub.f32 %v67, %v122
    %v143 = vsub.f32 %v68, %v125
    %v144 = vsub.f32 %v69, %v128
    %v145 = vsub.f32 %v70, %v131
    %v146 = vsub.f32 %v71, %v134
    %v147 = vsub.f32 %v72, %v137
    %v148 = vsub.f32 %v73, %v140
    %v149 = vmul.f32 %v141, 1.442695
    %v150 = vpow.pop %v149
    %v151 = vmul.f32 %v142, 1.442695
    %v152 = vpow.pop %v151
    %v153 = vmul.f32 %v143, 1.442695
    %v154 = vpow.pop %v153
    %v155 = vmul.f32 %v144, 1.442695
    %v156 = vpow.pop %v155
    %v157 = vmul.f32 %v145, 1.442695
    %v158 = vpow.pop %v157
    %v159 = vmul.f32 %v146, 1.442695
    %v160 = vpow.pop %v159
    %v161 = vmul.f32 %v147, 1.442695
    %v162 = vpow.pop %v161
    %v163 = vmul.f32 %v148, 1.442695
    %v164 = vpow.pop %v163
    %v165 = vsel %vm116, %v150, 0.0
    %166 = vadd.xlane.f32.xlu0 %v165
    %v167 = vpop.xlane.xlu0 %166
    %v168 = vsel %vm116, %v152, 0.0
    %169 = vadd.xlane.f32.xlu0 %v168
    %v170 = vpop.xlane.xlu0 %169
    %v171 = vsel %vm116, %v154, 0.0
    %172 = vadd.xlane.f32.xlu0 %v171
    %v173 = vpop.xlane.xlu0 %172
    %v174 = vsel %vm116, %v156, 0.0
    %175 = vadd.xlane.f32.xlu0 %v174
    %v176 = vpop.xlane.xlu0 %175
    %v177 = vsel %vm116, %v158, 0.0
    %178 = vadd.xlane.f32.xlu0 %v177
    %v179 = vpop.xlane.xlu0 %178
    %v180 = vsel %vm116, %v160, 0.0
    %181 = vadd.xlane.f32.xlu0 %v180
    %v182 = vpop.xlane.xlu0 %181
    %v183 = vsel %vm116, %v162, 0.0
    %184 = vadd.xlane.f32.xlu0 %v183
    %v185 = vpop.xlane.xlu0 %184
    %v186 = vsel %vm116, %v164, 0.0
    %187 = vadd.xlane.f32.xlu0 %v186
    %v188 = vpop.xlane.xlu0 %187
    %v189 = vlog2.pop %v167
    %v190 = vmul.f32 %v189, 0.6931472
    %v191 = vlog2.pop %v170
    %v192 = vmul.f32 %v191, 0.6931472
    %v193 = vlog2.pop %v173
    %v194 = vmul.f32 %v193, 0.6931472
    %v195 = vlog2.pop %v176
    %v196 = vmul.f32 %v195, 0.6931472
    %v197 = vlog2.pop %v179
    %v198 = vmul.f32 %v197, 0.6931472
    %v199 = vlog2.pop %v182
    %v200 = vmul.f32 %v199, 0.6931472
    %v201 = vlog2.pop %v185
    %v202 = vmul.f32 %v201, 0.6931472
    %v203 = vlog2.pop %v188
    %v204 = vmul.f32 %v203, 0.6931472
    %v205 = vsel %vm108, %v141, 0.0
    %v206 = vsel %vm109, %v142, 0.0
    %v207 = vsel %vm110, %v143, 0.0
    %v208 = vsel %vm111, %v144, 0.0
    %v209 = vsel %vm112, %v145, 0.0
    %v210 = vsel %vm113, %v146, 0.0
    %v211 = vsel %vm114, %v147, 0.0
    %v212 = vsel %vm115, %v148, 0.0
    %v213 = vsel %vm116, %v205, 0.0
    %214 = vadd.xlane.f32.xlu0 %v213
    %v215 = vpop.xlane.xlu0 %214
    %v216 = vsel %vm116, %v206, 0.0
    %217 = vadd.xlane.f32.xlu0 %v216
    %v218 = vpop.xlane.xlu0 %217
    %v219 = vsel %vm116, %v207, 0.0
    %220 = vadd.xlane.f32.xlu0 %v219
    %v221 = vpop.xlane.xlu0 %220
    %v222 = vsel %vm116, %v208, 0.0
    %223 = vadd.xlane.f32.xlu0 %v222
    %v224 = vpop.xlane.xlu0 %223
    %v225 = vsel %vm116, %v209, 0.0
    %226 = vadd.xlane.f32.xlu0 %v225
    %v227 = vpop.xlane.xlu0 %226
    %v228 = vsel %vm116, %v210, 0.0
    %229 = vadd.xlane.f32.xlu0 %v228
    %v230 = vpop.xlane.xlu0 %229
    %v231 = vsel %vm116, %v211, 0.0
    %232 = vadd.xlane.f32.xlu0 %v231
    %v233 = vpop.xlane.xlu0 %232
    %v234 = vsel %vm116, %v212, 0.0
    %235 = vadd.xlane.f32.xlu0 %v234
    %v236 = vpop.xlane.xlu0 %235
    %v237 = vsub.f32 %v190, %v215
    %v238 = vsub.f32 %v192, %v218
    %v239 = vsub.f32 %v194, %v221
    %v240 = vsub.f32 %v196, %v224
    %v241 = vsub.f32 %v198, %v227
    %v242 = vsub.f32 %v200, %v230
    %v243 = vsub.f32 %v202, %v233
    %v244 = vsub.f32 %v204, %v236
    %v245 = vsub.f32 0.0, %v237
    %v246 = vsub.f32 0.0, %v238
    %v247 = vsub.f32 0.0, %v239
    %v248 = vsub.f32 0.0, %v240
    %v249 = vsub.f32 0.0, %v241
    %v250 = vsub.f32 0.0, %v242
    %v251 = vsub.f32 0.0, %v243
    %v252 = vsub.f32 0.0, %v244
    %v253 = vmul.f32 %v245, 1.442695
    %v254 = vpow.pop %v253
    %v255 = vmul.f32 %v246, 1.442695
    %v256 = vpow.pop %v255
    %v257 = vmul.f32 %v247, 1.442695
    %v258 = vpow.pop %v257
    %v259 = vmul.f32 %v248, 1.442695
    %v260 = vpow.pop %v259
    %v261 = vmul.f32 %v249, 1.442695
    %v262 = vpow.pop %v261
    %v263 = vmul.f32 %v250, 1.442695
    %v264 = vpow.pop %v263
    %v265 = vmul.f32 %v251, 1.442695
    %v266 = vpow.pop %v265
    %v267 = vmul.f32 %v252, 1.442695
    %v268 = vpow.pop %v267
    %v269 = vsub.f32 1.0, %v254
    %v270 = vsub.f32 1.0, %v256
    %v271 = vsub.f32 1.0, %v258
    %v272 = vsub.f32 1.0, %v260
    %v273 = vsub.f32 1.0, %v262
    %v274 = vsub.f32 1.0, %v264
    %v275 = vsub.f32 1.0, %v266
    %v276 = vsub.f32 1.0, %v268
    %v277 = vmul.f32 %v269, %v269
    %v278 = vmul.f32 %v270, %v270
    %v279 = vmul.f32 %v271, %v271
    %v280 = vmul.f32 %v272, %v272
    %v281 = vmul.f32 %v273, %v273
    %v282 = vmul.f32 %v274, %v274
    %v283 = vmul.f32 %v275, %v275
    %v284 = vmul.f32 %v276, %v276
    %v285 = vmul.f32 %v277, 0.25
    %v286 = vmul.f32 %v278, 0.25
    %v287 = vmul.f32 %v279, 0.25
    %v288 = vmul.f32 %v280, 0.25
    %v289 = vmul.f32 %v281, 0.25
    %v290 = vmul.f32 %v282, 0.25
    %v291 = vmul.f32 %v283, 0.25
    %v292 = vmul.f32 %v284, 0.25
    %v293 = vmul.f32 %v285, %v237
    %v294 = vmul.f32 %v286, %v238
    %v295 = vmul.f32 %v287, %v239
    %v296 = vmul.f32 %v288, %v240
    %v297 = vmul.f32 %v289, %v241
    %v298 = vmul.f32 %v290, %v242
    %v299 = vmul.f32 %v291, %v243
    %v300 = vmul.f32 %v292, %v244
    %v301 = vxor.u32 %v66, 2147483648
    %v302 = vxor.u32 %v67, 2147483648
    %v303 = vxor.u32 %v68, 2147483648
    %v304 = vxor.u32 %v69, 2147483648
    %v305 = vxor.u32 %v70, 2147483648
    %v306 = vxor.u32 %v71, 2147483648
    %v307 = vxor.u32 %v72, 2147483648
    %v308 = vxor.u32 %v73, 2147483648
    %v309 = vmul.f32 %v301, 1.442695
    %v310 = vpow.pop %v309
    %v311 = vmul.f32 %v302, 1.442695
    %v312 = vpow.pop %v311
    %v313 = vmul.f32 %v303, 1.442695
    %v314 = vpow.pop %v313
    %v315 = vmul.f32 %v304, 1.442695
    %v316 = vpow.pop %v315
    %v317 = vmul.f32 %v305, 1.442695
    %v318 = vpow.pop %v317
    %v319 = vmul.f32 %v306, 1.442695
    %v320 = vpow.pop %v319
    %v321 = vmul.f32 %v307, 1.442695
    %v322 = vpow.pop %v321
    %v323 = vmul.f32 %v308, 1.442695
    %v324 = vpow.pop %v323
    %v325 = vadd.f32 %v310, 1.0
    %v326 = vadd.f32 %v312, 1.0
    %v327 = vadd.f32 %v314, 1.0
    %v328 = vadd.f32 %v316, 1.0
    %v329 = vadd.f32 %v318, 1.0
    %v330 = vadd.f32 %v320, 1.0
    %v331 = vadd.f32 %v322, 1.0
    %v332 = vadd.f32 %v324, 1.0
    %v333 = vrcp.pop %v325
    %v334 = vmul.f32 1.0, %v333
    %v335 = vrcp.pop %v326
    %v336 = vmul.f32 1.0, %v335
    %v337 = vrcp.pop %v327
    %v338 = vmul.f32 1.0, %v337
    %v339 = vrcp.pop %v328
    %v340 = vmul.f32 1.0, %v339
    %v341 = vrcp.pop %v329
    %v342 = vmul.f32 1.0, %v341
    %v343 = vrcp.pop %v330
    %v344 = vmul.f32 1.0, %v343
    %v345 = vrcp.pop %v331
    %v346 = vmul.f32 1.0, %v345
    %v347 = vrcp.pop %v332
    %v348 = vmul.f32 1.0, %v347
    %v349 = vld [vmem:[#allocation2] sm:$0x1]
    %vm350 = vcmask 7168
    %v351 = vsel %vm350, %v237, 0.0
    %v352 = vsel %vm350, %v238, 0.0
    %v353 = vadd.f32 %v351, %v352
    %v354 = vsel %vm350, %v239, 0.0
    %v355 = vadd.f32 %v353, %v354
    %v356 = vsel %vm350, %v240, 0.0
    %v357 = vadd.f32 %v355, %v356
    %v358 = vsel %vm350, %v241, 0.0
    %v359 = vadd.f32 %v357, %v358
    %v360 = vsel %vm350, %v242, 0.0
    %v361 = vadd.f32 %v359, %v360
    %v362 = vsel %vm350, %v243, 0.0
    %v363 = vadd.f32 %v361, %v362
    %v364 = vsel %vm350, %v244, 0.0
    %v365 = vadd.f32 %v363, %v364
    %366 = vadd.xlane.f32.xlu0 %v365
    %v367 = vpop.xlane.xlu0 %366
    %v368 = vrot.slane %v367, 4
    %v369 = vadd.f32 %v367, %v368
    %v370 = vrot.slane %v369, 2
    %v371 = vadd.f32 %v369, %v370
    %v372 = vrot.slane %v371, 1
    %v373 = vadd.f32 %v371, %v372
    %s374 = vtos %v373
    %v375 = vstv %s374
    %v376 = vadd.f32 %v349, %v375
    %vm377 = vcmask 0
    %378 = vst.msk [vmem:[#allocation2] sm:$0x1] %vm377, %v376
    %v379 = vld [vmem:[#allocation3] sm:$0x1]
    %v380 = vsel %vm350, %v293, 0.0
    %v381 = vsel %vm350, %v294, 0.0
    %v382 = vadd.f32 %v380, %v381
    %v383 = vsel %vm350, %v295, 0.0
    %v384 = vadd.f32 %v382, %v383
    %v385 = vsel %vm350, %v296, 0.0
    %v386 = vadd.f32 %v384, %v385
    %v387 = vsel %vm350, %v297, 0.0
    %v388 = vadd.f32 %v386, %v387
    %v389 = vsel %vm350, %v298, 0.0
    %v390 = vadd.f32 %v388, %v389
    %v391 = vsel %vm350, %v299, 0.0
    %v392 = vadd.f32 %v390, %v391
    %v393 = vsel %vm350, %v300, 0.0
    %v394 = vadd.f32 %v392, %v393
    %395 = vadd.xlane.f32.xlu0 %v394
    %v396 = vpop.xlane.xlu0 %395
    %v397 = vrot.slane %v396, 4
    %v398 = vadd.f32 %v396, %v397
    %v399 = vrot.slane %v398, 2
    %v400 = vadd.f32 %v398, %v399
    %v401 = vrot.slane %v400, 1
    %v402 = vadd.f32 %v400, %v401
    %s403 = vtos %v402
    %v404 = vstv %s403
    %v405 = vadd.f32 %v379, %v404
    %406 = vst.msk [vmem:[#allocation3] sm:$0x1] %vm377, %v405
    %v407 = vld [vmem:[#allocation4] sm:$0x1]
    %v408 = vsel %vm116, %v334, 0.0
    %v409 = vsel %vm116, %v336, 0.0
    %v410 = vadd.f32 %v408, %v409
    %v411 = vsel %vm116, %v338, 0.0
    %v412 = vadd.f32 %v410, %v411
    %v413 = vsel %vm116, %v340, 0.0
    %v414 = vadd.f32 %v412, %v413
    %v415 = vsel %vm116, %v342, 0.0
    %v416 = vadd.f32 %v414, %v415
    %v417 = vsel %vm116, %v344, 0.0
    %v418 = vadd.f32 %v416, %v417
    %v419 = vsel %vm116, %v346, 0.0
    %v420 = vadd.f32 %v418, %v419
    %v421 = vsel %vm116, %v348, 0.0
    %v422 = vadd.f32 %v420, %v421
    %v423 = vrot.slane %v422, 4
    %v424 = vadd.f32 %v422, %v423
    %v425 = vrot.slane %v424, 2
    %v426 = vadd.f32 %v424, %v425
    %v427 = vrot.slane %v426, 1
    %v428 = vadd.f32 %v426, %v427
    %v429 = vadd.f32 %v407, %v428
    %vm430 = vcmask 122880
    %431 = vst.msk [vmem:[#allocation4] sm:$0x1] %vm430, %v429
    %v432 = vld [vmem:[#allocation5] sm:$0x1]
    %v433 = vsel %vm108, %v334, 0.0
    %v434 = vsel %vm109, %v336, 0.0
    %v435 = vsel %vm110, %v338, 0.0
    %v436 = vsel %vm111, %v340, 0.0
    %v437 = vsel %vm112, %v342, 0.0
    %v438 = vsel %vm113, %v344, 0.0
    %v439 = vsel %vm114, %v346, 0.0
    %v440 = vsel %vm115, %v348, 0.0
    %v441 = vsel %vm116, %v433, 0.0
    %v442 = vsel %vm116, %v434, 0.0
    %v443 = vadd.f32 %v441, %v442
    %v444 = vsel %vm116, %v435, 0.0
    %v445 = vadd.f32 %v443, %v444
    %v446 = vsel %vm116, %v436, 0.0
    %v447 = vadd.f32 %v445, %v446
    %v448 = vsel %vm116, %v437, 0.0
    %v449 = vadd.f32 %v447, %v448
    %v450 = vsel %vm116, %v438, 0.0
    %v451 = vadd.f32 %v449, %v450
    %v452 = vsel %vm116, %v439, 0.0
    %v453 = vadd.f32 %v451, %v452
    %v454 = vsel %vm116, %v440, 0.0
    %v455 = vadd.f32 %v453, %v454
    %v456 = vrot.slane %v455, 4
    %v457 = vadd.f32 %v455, %v456
    %v458 = vrot.slane %v457, 2
    %v459 = vadd.f32 %v457, %v458
    %v460 = vrot.slane %v459, 1
    %v461 = vadd.f32 %v459, %v460
    %v462 = vadd.f32 %v432, %v461
    %463 = vst.msk [vmem:[#allocation5] sm:$0x1] %vm430, %v462
    // Predicated region
    $region14: #{tpu_custom_call.1} parent=1 // pred_check
      %p464 = pneg %p56
    $region15: #{tpu_custom_call.1} parent=1 // pred_check_branch
      %466 = sbr.rel (%p464) target = $region17
    $region16: #{tpu_custom_call.1} parent=1 // pred_region
      %vm467 = vcmp.eq.s32.totalorder %v83, 0
      %v468 = vld [vmem:[#allocation2] sm:$0x1]
      %470 = vset.pattern.permute.xlu0 0
      %471 = vperm.xlu0 %470, %v468
      %v472 = vpop.permute.xlu0 %471
      %v474 = vlaneseq
      %v475 = vshrl.u32 %v474, 7
      %v476 = vsub.s32 0, %v475
      %v477 = vrot.slane %v472, %v476
      %v478 = vsel %vm467, %v477, 0.0
      %vm479 = vcmp.eq.s32.totalorder %v83, 1
      %v480 = vld [vmem:[#allocation3] sm:$0x1]
      %482 = vset.pattern.permute.xlu0 0
      %483 = vperm.xlu0 %482, %v480
      %v484 = vpop.permute.xlu0 %483
      %v486 = vlaneseq
      %v487 = vshrl.u32 %v486, 7
      %v488 = vsub.s32 0, %v487
      %v489 = vrot.slane %v484, %v488
      %v490 = vsel %vm479, %v489, 0.0
      %v491 = vadd.f32 %v478, %v490
      %vm492 = vcmp.eq.s32.totalorder %v83, 2
      %v493 = vld [vmem:[#allocation4] sm:$0x1]
      %v494 = vsel %vm430, %v493, 0.0
      %495 = vadd.xlane.f32.xlu0 %v494
      %v496 = vpop.xlane.xlu0 %495
      %v497 = vrot.slane %v496, 4
      %v498 = vadd.f32 %v496, %v497
      %v499 = vrot.slane %v498, 2
      %v500 = vadd.f32 %v498, %v499
      %v501 = vrot.slane %v500, 1
      %v502 = vadd.f32 %v500, %v501
      %s503 = vtos %v502
      %v504 = vstv %s503
      %v505 = vsel %vm492, %v504, 0.0
      %v506 = vadd.f32 %v491, %v505
      %vm507 = vcmp.eq.s32.totalorder %v83, 3
      %v508 = vld [vmem:[#allocation5] sm:$0x1]
      %v509 = vsel %vm430, %v508, 0.0
      %510 = vadd.xlane.f32.xlu0 %v509
      %v511 = vpop.xlane.xlu0 %510
      %v512 = vrot.slane %v511, 4
      %v513 = vadd.f32 %v511, %v512
      %v514 = vrot.slane %v513, 2
      %v515 = vadd.f32 %v513, %v514
      %v516 = vrot.slane %v515, 1
      %v517 = vadd.f32 %v515, %v516
      %s518 = vtos %v517
      %v519 = vstv %s518
      %v520 = vsel %vm507, %v519, 0.0
      %v521 = vadd.f32 %v506, %v520
      %522 = vst [vmem:[#allocation6] sm:$0x1] %v521
    $region17: #{tpu_custom_call.1} parent=1 // pred_fallthru
      _
    // Predicated region
    $region18: #{tpu_custom_call.1} parent=1 // pred_check
      _
    $region19: #{tpu_custom_call.1} parent=1 // pred_check_branch
      %524 = sbr.rel (0) target = $region21
    $region20: #{tpu_custom_call.1} parent=1 // pred_region
      %s526 = ssub.s32 16, 16
      %527 = vsyncadd [#allocation7], %s526
      %s529 = sshll.u32 [#allocation6], 4
      %s530 = int_to_ptr.vmem [resolvable:$true] %s529
      %532 = dma.vmem_to_hbm [thread:$0]  %s530, 16, %s2, [#allocation7]
    $region21: #{tpu_custom_call.1} parent=1 // pred_fallthru
      _
    // Predicated region
    $region22: #{tpu_custom_call.1} parent=1 // pred_check
      _
    $region23: #{tpu_custom_call.1} parent=1 // pred_check_branch
      %534 = sbr.rel (0) target = $region25
    $region24: #{tpu_custom_call.1} parent=1 // pred_region
      %535 = dma.done [#allocation7], 16
    $region25: #{tpu_custom_call.1} parent=1 // pred_fallthru
      _
    %536 = vsyncpa [#allocation7], 1

</llo_original>
